<compile_context>
chip_gen: v6e
topology: v6e:2x2x1
jax: 0.10.0
libtpu: 0.0.40
codegen_flags: <defaults>
</compile_context>

<pallas_src>
import functools

import jax
import jax.numpy as jnp
from jax.experimental import pallas as pl
from jax.experimental.pallas import tpu as pltpu


def moe_fused_kernel(x_ref, w1_ref, b1_ref, w2_ref, b2_ref, wef_ref, bef_ref,
                     sel_ref, out_ref, gate_ref, *, num_experts, o_pad):
    """Fused gate-MLP + expert mixture for one batch tile (everything in VMEM).

    wef_ref is the expert weights flattened & lane-padded to (D, S*O_pad) with
    column s*O_pad + o equal to we[s, :, o] (zeros for o >= O); bef_ref is the
    matching (1, S*O_pad) bias.  sel_ref is the (S, S*O_pad) 0/1 select matrix
    used to lane-broadcast the gate with one MXU matmul.
    """
    x = x_ref[...]                                                   # (TB, D)

    # --- gate: Linear -> ReLU -> (dropout = identity) -> Linear -> softmax ---
    h = jnp.dot(x.astype(w1_ref.dtype), w1_ref[...],
                preferred_element_type=jnp.float32) + b1_ref[...]
    h = jnp.maximum(h, 0.0)
    logits = jnp.dot(h.astype(w2_ref.dtype), w2_ref[...],
                     preferred_element_type=jnp.float32) + b2_ref[...]
    m = jnp.max(logits, axis=-1, keepdims=True)
    e = jnp.exp(logits - m)
    denom = jnp.sum(e, axis=-1, keepdims=True)
    # approx=False keeps the 1e-5 reference tolerance; use approx=True at scale.
    gate = e * pl.reciprocal(denom, approx=False)                    # (TB, S) f32
    gate_ref[...] = gate.astype(gate_ref.dtype)

    # --- experts: one lane-dense MXU matmul (TB,D) x (D, S*O_pad), then ReLU ---
    eo = jnp.dot(x.astype(wef_ref.dtype), wef_ref[...],
                 preferred_element_type=jnp.float32) + bef_ref[...]
    eo = jnp.maximum(eo, 0.0)                                        # (TB, S*O_pad)

    # --- gate-weighted combine ---
    # Lane-broadcast the gate once via the (idle) MXU instead of S per-expert
    # single-lane extracts + cross-lane broadcasts.
    gate_b = jnp.dot(gate.astype(sel_ref.dtype), sel_ref[...],
                     preferred_element_type=jnp.float32)             # (TB, S*O_pad)
    prod = gate_b * eo
    out = prod[:, 0:o_pad]
    for s in range(1, num_experts):                                  # aligned VPU adds
        out = out + prod[:, s * o_pad:(s + 1) * o_pad]
    out_ref[...] = out.astype(out_ref.dtype)                         # (TB, O_pad)


def mixture_of_experts(x, params, *, matmul_dtype=jnp.float32):
    """Forward pass.  Returns (output (B, O), gate (B, S)).

    matmul_dtype=jnp.bfloat16 halves the weight-slab bytes and uses the bf16 MXU
    path on v6e/v7x (accumulation stays f32).  Default f32 matches the reference
    to 1e-5 at these toy sizes.
    """
    w1, b1 = params["w1"], params["b1"]            # (D,H), (1,H)
    w2, b2 = params["w2"], params["b2"]            # (H,S), (1,S)
    we_flat = params["we_flat"]                    # (D, S*O_pad), precomputed once
    be_flat = params["be_flat"]                    # (1, S*O_pad)
    sel = params["sel"]                            # (S, S*O_pad)
    O = params["output_size"]
    O_pad = params["o_pad"]

    B, D = x.shape
    H = w1.shape[1]
    S = w2.shape[1]

    if matmul_dtype != jnp.float32:
        x_mm = x.astype(matmul_dtype)
        w1, w2 = w1.astype(matmul_dtype), w2.astype(matmul_dtype)
        we_flat, sel = we_flat.astype(matmul_dtype), sel.astype(matmul_dtype)
    else:
        x_mm = x

    # Batch tiling: up to 128 rows per MXU pass; "parallel" axis feeds v7x's 2nd TC.
    TB = B if B <= 128 else 128
    assert B % TB == 0, "TODO(synk): handle ragged batch tiles"
    grid = (B // TB,)

    kernel = functools.partial(moe_fused_kernel, num_experts=S, o_pad=O_pad)

    out_pad, gate = pl.pallas_call(
        kernel,
        grid=grid,
        out_shape=(jax.ShapeDtypeStruct((B, O_pad), jnp.float32),
                   jax.ShapeDtypeStruct((B, S), jnp.float32)),
        in_specs=[
            pl.BlockSpec((TB, D), lambda i: (i, 0)),           # x
            pl.BlockSpec((D, H), lambda i: (0, 0)),            # w1 (resident)
            pl.BlockSpec((1, H), lambda i: (0, 0)),            # b1
            pl.BlockSpec((H, S), lambda i: (0, 0)),            # w2
            pl.BlockSpec((1, S), lambda i: (0, 0)),            # b2
            pl.BlockSpec((D, S * O_pad), lambda i: (0, 0)),    # we_flat (resident)
            pl.BlockSpec((1, S * O_pad), lambda i: (0, 0)),    # be_flat
            pl.BlockSpec((S, S * O_pad), lambda i: (0, 0)),    # sel
        ],
        out_specs=(pl.BlockSpec((TB, O_pad), lambda i: (i, 0)),
                   pl.BlockSpec((TB, S), lambda i: (i, 0))),
        compiler_params=pltpu.CompilerParams(
            dimension_semantics=("parallel",),
            vmem_limit_bytes=32 * 1024 * 1024),
    )(x_mm, w1, b1, w2, b2, we_flat, be_flat, sel)

    return out_pad[:, :O], gate


def reference(x, params):
    """Pure-JAX reference mirroring the torch forward."""
    h = jnp.maximum(x @ params["w1"] + params["b1"][0], 0.0)
    logits = h @ params["w2"] + params["b2"][0]
    gate = jax.nn.softmax(logits, axis=-1)
    S = params["we"].shape[0]
    expert_outs = jnp.stack(
        [jnp.maximum(x @ params["we"][e] + params["be"][e, 0], 0.0) for e in range(S)],
        axis=-2)                                             # (B, S, O)
    out = jnp.sum(gate[..., None] * expert_outs, axis=-2)    # (B, O)
    return out, gate


def init_params(key, input_size, hidden_size, output_size, num_source):
    """torch.nn.Linear-style init U(-1/sqrt(fan_in), 1/sqrt(fan_in)).

    Also precomputes (ONCE, hoisted out of the per-call path) the lane-padded
    flattened expert weights/bias and the gate-broadcast select matrix.
    """
    ks = jax.random.split(key, 8)

    def unif(k, shape, fan_in):
        bound = 1.0 / jnp.sqrt(jnp.float32(fan_in))
        return jax.random.uniform(k, shape, jnp.float32, -bound, bound)

    we = unif(ks[4], (num_source, input_size, output_size), input_size)
    be = unif(ks[5], (num_source, 1, output_size), input_size)

    o_pad = ((output_size + 127) // 128) * 128
    pad = o_pad - output_size
    # column s*O_pad + o of we_flat is we[s, :, o] (zero for o >= O)
    we_flat = jnp.pad(jnp.transpose(we, (1, 0, 2)), ((0, 0), (0, 0), (0, pad)))
    we_flat = we_flat.reshape(input_size, num_source * o_pad)
    be_flat = jnp.pad(jnp.transpose(be, (1, 0, 2)), ((0, 0), (0, 0), (0, pad)))
    be_flat = be_flat.reshape(1, num_source * o_pad)
    sel = jnp.kron(jnp.eye(num_source, dtype=jnp.float32),
                   jnp.ones((1, o_pad), jnp.float32))         # (S, S*O_pad)

    return {
        "w1": unif(ks[0], (input_size, hidden_size), input_size),
        "b1": unif(ks[1], (1, hidden_size), input_size),
        "w2": unif(ks[2], (hidden_size, num_source), hidden_size),
        "b2": unif(ks[3], (1, num_source), hidden_size),
        "we": we, "be": be,                 # originals (reference only)
        "we_flat": we_flat, "be_flat": be_flat, "sel": sel,
        "output_size": output_size, "o_pad": o_pad,
    }


if __name__ == "__main__":
    B, D, H, O, S = 8, 32, 32, 32, 4   # batch, input_size, gate hidden, output_size, num_source

    key = jax.random.PRNGKey(0)
    kx, kp = jax.random.split(key)
    x = jax.random.normal(kx, (B, D), jnp.float32)
    params = init_params(kp, D, H, O, S)

    out, gate = jax.block_until_ready(mixture_of_experts(x, params))
    out_ref, gate_ref = reference(x, params)

    assert out.shape == (B, O) and gate.shape == (B, S)
    assert jnp.allclose(out, out_ref, rtol=1e-5, atol=1e-5)
    assert jnp.allclose(gate, gate_ref, rtol=1e-5, atol=1e-5)

    print("KERNEL_OK")
</pallas_src>

<mosaic_0001>
module attributes {stable_mosaic.version = 11 : i64} {
  func.func @moe_fused_kernel(%arg0: i32, %arg1: memref<8x32xf32, #tpu.memory_space<vmem>>, %arg2: memref<32x32xf32, #tpu.memory_space<vmem>>, %arg3: memref<1x32xf32, #tpu.memory_space<vmem>>, %arg4: memref<32x4xf32, #tpu.memory_space<vmem>>, %arg5: memref<1x4xf32, #tpu.memory_space<vmem>>, %arg6: memref<32x512xf32, #tpu.memory_space<vmem>>, %arg7: memref<1x512xf32, #tpu.memory_space<vmem>>, %arg8: memref<4x512xf32, #tpu.memory_space<vmem>>, %arg9: memref<8x128xf32, #tpu.memory_space<vmem>>, %arg10: memref<8x4xf32, #tpu.memory_space<vmem>>) attributes {dimension_semantics = [#tpu.dimension_semantics<parallel>], iteration_bounds = array<i64: 1>, scalar_prefetch = 0 : i64, scratch_operands = 0 : i64, tpu.core_type = #tpu.core_type<tc>, window_params = [{transform_indices = @transform_0, window_bounds = array<i64: 8, 32>}, {pipeline_mode = #tpu.pipeline_mode<synchronous>, transform_indices = @transform_1, window_bounds = array<i64: 32, 32>}, {pipeline_mode = #tpu.pipeline_mode<synchronous>, transform_indices = @transform_2, window_bounds = array<i64: 1, 32>}, {pipeline_mode = #tpu.pipeline_mode<synchronous>, transform_indices = @transform_3, window_bounds = array<i64: 32, 4>}, {pipeline_mode = #tpu.pipeline_mode<synchronous>, transform_indices = @transform_4, window_bounds = array<i64: 1, 4>}, {pipeline_mode = #tpu.pipeline_mode<synchronous>, transform_indices = @transform_5, window_bounds = array<i64: 32, 512>}, {pipeline_mode = #tpu.pipeline_mode<synchronous>, transform_indices = @transform_6, window_bounds = array<i64: 1, 512>}, {pipeline_mode = #tpu.pipeline_mode<synchronous>, transform_indices = @transform_7, window_bounds = array<i64: 4, 512>}, {transform_indices = @transform_8, window_bounds = array<i64: 8, 128>}, {transform_indices = @transform_9, window_bounds = array<i64: 8, 4>}]} {
    %c0 = arith.constant 0 : index
    %c0_0 = arith.constant 0 : index
    %0 = vector.load %arg1[%c0, %c0_0] : memref<8x32xf32, #tpu.memory_space<vmem>>, vector<8x32xf32>
    %c0_1 = arith.constant 0 : index
    %c0_2 = arith.constant 0 : index
    %1 = vector.load %arg2[%c0_1, %c0_2] : memref<32x32xf32, #tpu.memory_space<vmem>>, vector<32x32xf32>
    %cst = arith.constant dense<0.000000e+00> : vector<8x32xf32>
    %2 = tpu.matmul %0, %1, %cst {dimension_numbers = #tpu.dot_dimension_numbers<[1], [0], [0], [1], [0, 0, 1, 1], [], []>} : vector<8x32xf32>, vector<32x32xf32>, vector<8x32xf32> -> vector<8x32xf32>
    %c0_3 = arith.constant 0 : index
    %c0_4 = arith.constant 0 : index
    %3 = vector.load %arg3[%c0_3, %c0_4] : memref<1x32xf32, #tpu.memory_space<vmem>>, vector<1x32xf32>
    %4 = vector.broadcast %3 : vector<1x32xf32> to vector<8x32xf32>
    %5 = arith.addf %2, %4 : vector<8x32xf32>
    %cst_5 = arith.constant 0.000000e+00 : f32
    %6 = vector.broadcast %cst_5 : f32 to vector<8x32xf32>
    %7 = arith.maximumf %5, %6 : vector<8x32xf32>
    %c0_6 = arith.constant 0 : index
    %c0_7 = arith.constant 0 : index
    %8 = vector.load %arg4[%c0_6, %c0_7] : memref<32x4xf32, #tpu.memory_space<vmem>>, vector<32x4xf32>
    %cst_8 = arith.constant dense<0.000000e+00> : vector<8x4xf32>
    %9 = tpu.matmul %7, %8, %cst_8 {dimension_numbers = #tpu.dot_dimension_numbers<[1], [0], [0], [1], [0, 0, 1, 1], [], []>} : vector<8x32xf32>, vector<32x4xf32>, vector<8x4xf32> -> vector<8x4xf32>
    %c0_9 = arith.constant 0 : index
    %c0_10 = arith.constant 0 : index
    %10 = vector.load %arg5[%c0_9, %c0_10] : memref<1x4xf32, #tpu.memory_space<vmem>>, vector<1x4xf32>
    %11 = vector.broadcast %10 : vector<1x4xf32> to vector<8x4xf32>
    %12 = arith.addf %9, %11 : vector<8x4xf32>
    %cst_11 = arith.constant dense<0xFF800000> : vector<8xf32>
    %13 = vector.multi_reduction <maximumf>, %12, %cst_11 [1] : vector<8x4xf32> to vector<8xf32>
    %14 = vector.shape_cast %13 : vector<8xf32> to vector<8x1xf32>
    %15 = vector.broadcast %14 : vector<8x1xf32> to vector<8x4xf32>
    %16 = arith.subf %12, %15 : vector<8x4xf32>
    %17 = math.exp %16 : vector<8x4xf32>
    %cst_12 = arith.constant dense<0.000000e+00> : vector<8xf32>
    %18 = vector.multi_reduction <add>, %17, %cst_12 [1] : vector<8x4xf32> to vector<8xf32>
    %19 = vector.shape_cast %18 : vector<8xf32> to vector<8x1xf32>
    %20 = tpu.reciprocal %19 : vector<8x1xf32> -> vector<8x1xf32>
    %21 = vector.broadcast %20 : vector<8x1xf32> to vector<8x4xf32>
    %22 = arith.mulf %17, %21 : vector<8x4xf32>
    %c0_13 = arith.constant 0 : index
    %c0_14 = arith.constant 0 : index
    %23 = vector.load %arg10[%c0_13, %c0_14] : memref<8x4xf32, #tpu.memory_space<vmem>>, vector<8x4xf32>
    tpu.vector_store %arg10[%c0_13, %c0_14], %22 {strides = array<i32>} : memref<8x4xf32, #tpu.memory_space<vmem>>, vector<8x4xf32>,
    %c0_15 = arith.constant 0 : index
    %c0_16 = arith.constant 0 : index
    %24 = vector.load %arg6[%c0_15, %c0_16] : memref<32x512xf32, #tpu.memory_space<vmem>>, vector<32x512xf32>
    %cst_17 = arith.constant dense<0.000000e+00> : vector<8x512xf32>
    %25 = tpu.matmul %0, %24, %cst_17 {dimension_numbers = #tpu.dot_dimension_numbers<[1], [0], [0], [1], [0, 0, 1, 1], [], []>} : vector<8x32xf32>, vector<32x512xf32>, vector<8x512xf32> -> vector<8x512xf32>
    %c0_18 = arith.constant 0 : index
    %c0_19 = arith.constant 0 : index
    %26 = vector.load %arg7[%c0_18, %c0_19] : memref<1x512xf32, #tpu.memory_space<vmem>>, vector<1x512xf32>
    %27 = vector.broadcast %26 : vector<1x512xf32> to vector<8x512xf32>
    %28 = arith.addf %25, %27 : vector<8x512xf32>
    %cst_20 = arith.constant 0.000000e+00 : f32
    %29 = vector.broadcast %cst_20 : f32 to vector<8x512xf32>
    %30 = arith.maximumf %28, %29 : vector<8x512xf32>
    %c0_21 = arith.constant 0 : index
    %c0_22 = arith.constant 0 : index
    %31 = vector.load %arg8[%c0_21, %c0_22] : memref<4x512xf32, #tpu.memory_space<vmem>>, vector<4x512xf32>
    %cst_23 = arith.constant dense<0.000000e+00> : vector<8x512xf32>
    %32 = tpu.matmul %22, %31, %cst_23 {dimension_numbers = #tpu.dot_dimension_numbers<[1], [0], [0], [1], [0, 0, 1, 1], [], []>} : vector<8x4xf32>, vector<4x512xf32>, vector<8x512xf32> -> vector<8x512xf32>
    %33 = arith.mulf %32, %30 : vector<8x512xf32>
    %34 = vector.extract_strided_slice %33 {offsets = [0, 0], sizes = [8, 128], strides = [1, 1]} : vector<8x512xf32> to vector<8x128xf32>
    %35 = vector.extract_strided_slice %33 {offsets = [0, 128], sizes = [8, 128], strides = [1, 1]} : vector<8x512xf32> to vector<8x128xf32>
    %36 = arith.addf %34, %35 : vector<8x128xf32>
    %37 = vector.extract_strided_slice %33 {offsets = [0, 256], sizes = [8, 128], strides = [1, 1]} : vector<8x512xf32> to vector<8x128xf32>
    %38 = arith.addf %36, %37 : vector<8x128xf32>
    %39 = vector.extract_strided_slice %33 {offsets = [0, 384], sizes = [8, 128], strides = [1, 1]} : vector<8x512xf32> to vector<8x128xf32>
    %40 = arith.addf %38, %39 : vector<8x128xf32>
    %c0_24 = arith.constant 0 : index
    %c0_25 = arith.constant 0 : index
    %41 = vector.load %arg9[%c0_24, %c0_25] : memref<8x128xf32, #tpu.memory_space<vmem>>, vector<8x128xf32>
    tpu.vector_store %arg9[%c0_24, %c0_25], %40 {strides = array<i32>} : memref<8x128xf32, #tpu.memory_space<vmem>>, vector<8x128xf32>,
    return
  }
  func.func @transform_0(%arg0: i32) -> (i32, i32) {
    %c0_i32 = arith.constant 0 : i32
    %c0_i32_0 = arith.constant 0 : i32
    return %arg0, %c0_i32 : i32, i32
  }
  func.func @transform_1(%arg0: i32) -> (i32, i32) {
    %c0_i32 = arith.constant 0 : i32
    %c0_i32_0 = arith.constant 0 : i32
    %c0_i32_1 = arith.constant 0 : i32
    return %c0_i32, %c0_i32_0 : i32, i32
  }
  func.func @transform_2(%arg0: i32) -> (i32, i32) {
    %c0_i32 = arith.constant 0 : i32
    %c0_i32_0 = arith.constant 0 : i32
    %c0_i32_1 = arith.constant 0 : i32
    return %c0_i32, %c0_i32_0 : i32, i32
  }
  func.func @transform_3(%arg0: i32) -> (i32, i32) {
    %c0_i32 = arith.constant 0 : i32
    %c0_i32_0 = arith.constant 0 : i32
    %c0_i32_1 = arith.constant 0 : i32
    return %c0_i32, %c0_i32_0 : i32, i32
  }
  func.func @transform_4(%arg0: i32) -> (i32, i32) {
    %c0_i32 = arith.constant 0 : i32
    %c0_i32_0 = arith.constant 0 : i32
    %c0_i32_1 = arith.constant 0 : i32
    return %c0_i32, %c0_i32_0 : i32, i32
  }
  func.func @transform_5(%arg0: i32) -> (i32, i32) {
    %c0_i32 = arith.constant 0 : i32
    %c0_i32_0 = arith.constant 0 : i32
    %c0_i32_1 = arith.constant 0 : i32
    return %c0_i32, %c0_i32_0 : i32, i32
  }
  func.func @transform_6(%arg0: i32) -> (i32, i32) {
    %c0_i32 = arith.constant 0 : i32
    %c0_i32_0 = arith.constant 0 : i32
    %c0_i32_1 = arith.constant 0 : i32
    return %c0_i32, %c0_i32_0 : i32, i32
  }
  func.func @transform_7(%arg0: i32) -> (i32, i32) {
    %c0_i32 = arith.constant 0 : i32
    %c0_i32_0 = arith.constant 0 : i32
    %c0_i32_1 = arith.constant 0 : i32
    return %c0_i32, %c0_i32_0 : i32, i32
  }
  func.func @transform_8(%arg0: i32) -> (i32, i32) {
    %c0_i32 = arith.constant 0 : i32
    %c0_i32_0 = arith.constant 0 : i32
    return %arg0, %c0_i32 : i32, i32
  }
  func.func @transform_9(%arg0: i32) -> (i32, i32) {
    %c0_i32 = arith.constant 0 : i32
    %c0_i32_0 = arith.constant 0 : i32
    return %arg0, %c0_i32 : i32, i32
  }
}

</mosaic_0001>

<llo_original>
// kernel: tpu_custom_call.1
$region0: #{tpu_custom_call.1}
  #allocation0 [shape = 'u32[]', space=smem, size = 0x4, offset = 0x4, fixed_abs, tag = 'smem constant byte address 0x4 - core index']
  #allocation1 [shape = 'u32[144,128]{1,0:T(1,128)}', space=vmem, size = 0x12000, scoped, tag = 'internal scratch']
  %s0 = inlined_call_operand.hbm [shape: f32[8,32], index: 0, kind: input, shape index: {}]
  %s1 = inlined_call_operand.vmem [shape: f32[32,32], index: 1, kind: input, shape index: {}]
  %s2 = inlined_call_operand.hbm [shape: f32[1,32], index: 2, kind: input, shape index: {}]
  %s3 = inlined_call_operand.vmem [shape: f32[32,4], index: 3, kind: input, shape index: {}]
  %s4 = inlined_call_operand.hbm [shape: f32[1,4], index: 4, kind: input, shape index: {}]
  %s5 = inlined_call_operand.hbm [shape: f32[32,512], index: 5, kind: input, shape index: {}]
  %s6 = inlined_call_operand.hbm [shape: f32[1,512], index: 6, kind: input, shape index: {}]
  %s7 = inlined_call_operand.vmem [shape: f32[4,512], index: 7, kind: input, shape index: {}]
  %s8 = inlined_call_operand.hbm [shape: f32[8,128], index: 8, kind: output, shape index: {0}]
  %s9 = inlined_call_operand.vmem [shape: f32[8,4], index: 9, kind: output, shape index: {1}]
  %10 = xla_tuple %s8, %s9
  %s11 = sld [smem:[#allocation0]]
  $region70: #{tpu_custom_call.1} parent=0
    _
  %s13 = ssub.s32 1, %s11
  %s14 = scalar_select 0, %s13, %s11
  $region1: #{tpu_custom_call.1} parent=0
    #allocation2 [shape = 'u8[4096]{0}', space=vmem, size = 0x1000, scoped, tag = 'input window, operand 0, single buffered']
    #allocation3 [shape = 's32[1]{0}', space=sflag, size = 0x4, scoped, tag = 'scoped memory for tpu_custom_call.1']
    #allocation4 [shape = 's32[1]{0}', space=sflag, size = 0x4, scoped, tag = 'scoped memory for tpu_custom_call.1']
    #allocation5 [shape = 'u8[512]{0}', space=vmem, size = 0x400, scoped, tag = 'input window, operand 2, single buffered']
    #allocation6 [shape = 's32[1]{0}', space=sflag, size = 0x4, scoped, tag = 'scoped memory for tpu_custom_call.1']
    #allocation7 [shape = 'u8[512]{0}', space=vmem, size = 0x400, scoped, tag = 'input window, operand 4, single buffered']
    #allocation8 [shape = 'u8[65536]{0}', space=vmem, size = 0x10000, scoped, tag = 'input window, operand 5, single buffered']
    #allocation9 [shape = 's32[1]{0}', space=sflag, size = 0x4, scoped, tag = 'scoped memory for tpu_custom_call.1']
    #allocation10 [shape = 'u8[2048]{0}', space=vmem, size = 0x800, scoped, tag = 'input window, operand 6, single buffered']
    #allocation11 [shape = 'u8[4096]{0}', space=vmem, size = 0x1000, scoped, tag = 'output window, operand 0, single buffered']
    %15 = vsyncpa [#allocation3], 0
    %16 = vsyncpa [#allocation6], 0
    %17 = vsyncpa [#allocation9], 0
    %18 = vsyncpa [#allocation4], 0
    // Predicated region
    $region2: #{tpu_custom_call.1} parent=1 // pred_check
      _
    $region3: #{tpu_custom_call.1} parent=1 // pred_check_branch
      %20 = sbr.rel (0) target = $region5
    $region4: #{tpu_custom_call.1} parent=1 // pred_region
      %s22 = ssub.s32 128, 128
      %23 = vsyncadd [#allocation3], %s22
      %s25 = sshll.u32 [#allocation2], 4
      %s26 = int_to_ptr.vmem [resolvable:$true] %s25
      %28 = dma.hbm_to_vmem [thread:$0]  %s0, 128, %s26, [#allocation3]
    $region5: #{tpu_custom_call.1} parent=1 // pred_fallthru
      _
    // Predicated region
    $region6: #{tpu_custom_call.1} parent=1 // pred_check
      _
    $region7: #{tpu_custom_call.1} parent=1 // pred_check_branch
      %30 = sbr.rel (0) target = $region9
    $region8: #{tpu_custom_call.1} parent=1 // pred_region
      _
    $region9: #{tpu_custom_call.1} parent=1 // pred_fallthru
      _
    // Predicated region
    $region10: #{tpu_custom_call.1} parent=1 // pred_check
      _
    $region11: #{tpu_custom_call.1} parent=1 // pred_check_branch
      %32 = sbr.rel (0) target = $region13
    $region12: #{tpu_custom_call.1} parent=1 // pred_region
      %s34 = ssub.s32 16, 16
      %35 = vsyncadd [#allocation6], %s34
      %s37 = sshll.u32 [#allocation5], 4
      %s38 = int_to_ptr.vmem [resolvable:$true] %s37
      %40 = dma.hbm_to_vmem [thread:$0]  %s2, 16, %s38, [#allocation6]
    $region13: #{tpu_custom_call.1} parent=1 // pred_fallthru
      _
    // Predicated region
    $region14: #{tpu_custom_call.1} parent=1 // pred_check
      _
    $region15: #{tpu_custom_call.1} parent=1 // pred_check_branch
      %42 = sbr.rel (0) target = $region17
    $region16: #{tpu_custom_call.1} parent=1 // pred_region
      _
    $region17: #{tpu_custom_call.1} parent=1 // pred_fallthru
      _
    // Predicated region
    $region18: #{tpu_custom_call.1} parent=1 // pred_check
      _
    $region19: #{tpu_custom_call.1} parent=1 // pred_check_branch
      %44 = sbr.rel (0) target = $region21
    $region20: #{tpu_custom_call.1} parent=1 // pred_region
      %s46 = ssub.s32 16, 16
      %47 = vsyncadd [#allocation6], %s46
      %s49 = sshll.u32 [#allocation7], 4
      %s50 = int_to_ptr.vmem [resolvable:$true] %s49
      %52 = dma.hbm_to_vmem [thread:$0]  %s4, 16, %s50, [#allocation6]
    $region21: #{tpu_custom_call.1} parent=1 // pred_fallthru
      _
    // Predicated region
    $region22: #{tpu_custom_call.1} parent=1 // pred_check
      _
    $region23: #{tpu_custom_call.1} parent=1 // pred_check_branch
      %54 = sbr.rel (0) target = $region25
    $region24: #{tpu_custom_call.1} parent=1 // pred_region
      %s56 = ssub.s32 2048, 2048
      %57 = vsyncadd [#allocation9], %s56
      %s58 = sshll.u32 [#allocation8], 4
      %s59 = int_to_ptr.vmem [resolvable:$true] %s58
      %64 = dma.hbm_to_vmem [thread:$0]  %s5, 2048, %s59, [#allocation9], 512, 512, 32
    $region25: #{tpu_custom_call.1} parent=1 // pred_fallthru
      _
    // Predicated region
    $region26: #{tpu_custom_call.1} parent=1 // pred_check
      _
    $region27: #{tpu_custom_call.1} parent=1 // pred_check_branch
      %66 = sbr.rel (0) target = $region29
    $region28: #{tpu_custom_call.1} parent=1 // pred_region
      %s68 = ssub.s32 64, 64
      %69 = vsyncadd [#allocation9], %s68
      %s71 = sshll.u32 [#allocation10], 4
      %s72 = int_to_ptr.vmem [resolvable:$true] %s71
      %74 = dma.hbm_to_vmem [thread:$0]  %s6, 64, %s72, [#allocation9]
    $region29: #{tpu_custom_call.1} parent=1 // pred_fallthru
      _
    // Predicated region
    $region30: #{tpu_custom_call.1} parent=1 // pred_check
      _
    $region31: #{tpu_custom_call.1} parent=1 // pred_check_branch
      %76 = sbr.rel (0) target = $region33
    $region32: #{tpu_custom_call.1} parent=1 // pred_region
      _
    $region33: #{tpu_custom_call.1} parent=1 // pred_fallthru
      _
    // Predicated region
    $region34: #{tpu_custom_call.1} parent=1 // pred_check
      _
    $region35: #{tpu_custom_call.1} parent=1 // pred_check_branch
      %78 = sbr.rel (0) target = $region37
    $region36: #{tpu_custom_call.1} parent=1 // pred_region
      %79 = dma.done [#allocation3], 128
    $region37: #{tpu_custom_call.1} parent=1 // pred_fallthru
      _
    // Predicated region
    $region38: #{tpu_custom_call.1} parent=1 // pred_check
      _
    $region39: #{tpu_custom_call.1} parent=1 // pred_check_branch
      %81 = sbr.rel (0) target = $region41
    $region40: #{tpu_custom_call.1} parent=1 // pred_region
      %82 = dma.done [#allocation6], 16
    $region41: #{tpu_custom_call.1} parent=1 // pred_fallthru
      _
    // Predicated region
    $region42: #{tpu_custom_call.1} parent=1 // pred_check
      _
    $region43: #{tpu_custom_call.1} parent=1 // pred_check_branch
      %84 = sbr.rel (0) target = $region45
    $region44: #{tpu_custom_call.1} parent=1 // pred_region
      %85 = dma.done [#allocation6], 16
    $region45: #{tpu_custom_call.1} parent=1 // pred_fallthru
      _
    // Predicated region
    $region46: #{tpu_custom_call.1} parent=1 // pred_check
      _
    $region47: #{tpu_custom_call.1} parent=1 // pred_check_branch
      %87 = sbr.rel (0) target = $region49
    $region48: #{tpu_custom_call.1} parent=1 // pred_region
      %88 = dma.done [#allocation9], 2048
    $region49: #{tpu_custom_call.1} parent=1 // pred_fallthru
      _
    // Predicated region
    $region50: #{tpu_custom_call.1} parent=1 // pred_check
      _
    $region51: #{tpu_custom_call.1} parent=1 // pred_check_branch
      %90 = sbr.rel (0) target = $region53
    $region52: #{tpu_custom_call.1} parent=1 // pred_region
      %91 = dma.done [#allocation9], 64
    $region53: #{tpu_custom_call.1} parent=1 // pred_fallthru
      _
    %v92 = vld [vmem:[#allocation2] sm:$0xff]
    %v93 = vld [vmem:[%s1] sm:$0xff]
    %v94 = vld [vmem:[%s1 + $0x8] sm:$0xff]
    %v95 = vld [vmem:[%s1 + $0x10] sm:$0xff]
    %v96 = vld [vmem:[%s1 + $0x18] sm:$0xff]
    %v97 = vld [vmem:[#allocation5] sm:$0x1]
    %v99 = vlaneseq
    %v100 = vshrl.u32 %v99, 7
    %v101 = vsub.s32 0, %v100
    %v102 = vrot.slane %v97, %v101
    %vm104 = vcmask 261120
    %v106 = vsel %vm104, %v92, 0
    %108 = vmatprep.subr.mxu0 0.0
    %109 = vmatpush1.msra.mxu0 0.0
    %110 = vmatprep.subr.mxu0 0.0
    %111 = vmatpush1.msra.mxu0 0.0
    %112 = vmatprep.subr.mxu0 0.0
    %113 = vmatpush1.msra.mxu0 0.0
    %114 = vmatprep.subr.mxu0 0.0
    %115 = vmatpush1.msra.mxu0 0.0
    %116 = vmatprep.subr.mxu0 0.0
    %117 = vmatpush1.msra.mxu0 0.0
    %118 = vmatprep.subr.mxu0 0.0
    %119 = vmatpush1.msra.mxu0 0.0
    %120 = vmatprep.subr.mxu0 0.0
    %121 = vmatpush1.msra.mxu0 0.0
    %122 = vmatprep.subr.mxu0 0.0
    %123 = vmatpush1.msra.mxu0 0.0
    %124 = vmatprep.subr.mxu0 0.0
    %125 = vmatpush1.msra.mxu0 0.0
    %126 = vmatprep.subr.mxu0 0.0
    %127 = vmatpush1.msra.mxu0 0.0
    %128 = vmatprep.subr.mxu0 0.0
    %129 = vmatpush1.msra.mxu0 0.0
    %130 = vmatprep.subr.mxu0 0.0
    %131 = vmatpush1.msra.mxu0 0.0
    %132 = vmatprep.subr.mxu0 0.0
    %133 = vmatpush1.msra.mxu0 %v96
    %134 = vmatprep.subr.mxu0 0.0
    %135 = vmatpush1.msra.mxu0 %v95
    %136 = vmatprep.subr.mxu0 0.0
    %137 = vmatpush1.msra.mxu0 %v94
    %138 = vmatprep.subr.mxu0 0.0
    %139 = vmatpush1.msra.mxu0 %v93
    %140 = vmatprep.subr.mxu0 0.0
    %141 = vmatpush2.msra.mxu0 0.0
    %142 = vmatprep.subr.mxu0 0.0
    %143 = vmatpush2.msra.mxu0 0.0
    %144 = vmatprep.subr.mxu0 0.0
    %145 = vmatpush2.msra.mxu0 0.0
    %146 = vmatprep.subr.mxu0 0.0
    %147 = vmatpush2.msra.mxu0 0.0
    %148 = vmatprep.subr.mxu0 0.0
    %149 = vmatpush2.msra.mxu0 0.0
    %150 = vmatprep.subr.mxu0 0.0
    %151 = vmatpush2.msra.mxu0 0.0
    %152 = vmatprep.subr.mxu0 0.0
    %153 = vmatpush2.msra.mxu0 0.0
    %154 = vmatprep.subr.mxu0 0.0
    %155 = vmatpush2.msra.mxu0 0.0
    %156 = vmatprep.subr.mxu0 0.0
    %157 = vmatpush2.msra.mxu0 0.0
    %158 = vmatprep.subr.mxu0 0.0
    %159 = vmatpush2.msra.mxu0 0.0
    %160 = vmatprep.subr.mxu0 0.0
    %161 = vmatpush2.msra.mxu0 0.0
    %162 = vmatprep.subr.mxu0 0.0
    %163 = vmatpush2.msra.mxu0 0.0
    %164 = vmatprep.subr.mxu0 0.0
    %165 = vmatpush2.msra.mxu0 0.0
    %166 = vmatprep.subr.mxu0 0.0
    %167 = vmatpush2.msra.mxu0 0.0
    %168 = vmatprep.subr.mxu0 0.0
    %169 = vmatpush2.msra.mxu0 0.0
    %170 = vmatprep.subr.mxu0 0.0
    %171 = vmatpush2.msra.mxu0 0.0
    %172 = vmatprep.mubr.f32.mxu0 0.0
    %173 = vmatmul.mubr.f32.gmra.mxu0 %v106
    %v174 = vpop.f32.mrf.mxu0
    %v175 = vadd.f32 %v102, %v174
    %v176 = vpop.f32.mrf.mxu0
    %177 = vdwg.mxu0
    %v178 = vmax.f32 %v175, 0.0
    %v179 = vld [vmem:[%s3] sm:$0xff]
    %v180 = vld [vmem:[%s3 + $0x8] sm:$0xff]
    %v181 = vld [vmem:[%s3 + $0x10] sm:$0xff]
    %v182 = vld [vmem:[%s3 + $0x18] sm:$0xff]
    %v183 = vld [vmem:[#allocation7] sm:$0x1]
    %v185 = vlaneseq
    %v186 = vshrl.u32 %v185, 7
    %v187 = vsub.s32 0, %v186
    %v188 = vrot.slane %v183, %v187
    %v191 = vsel %vm104, %v178, 0
    %193 = vmatprep.subr.mxu0 0.0
    %194 = vmatpush1.msra.mxu0 0.0
    %195 = vmatprep.subr.mxu0 0.0
    %196 = vmatpush1.msra.mxu0 0.0
    %197 = vmatprep.subr.mxu0 0.0
    %198 = vmatpush1.msra.mxu0 0.0
    %199 = vmatprep.subr.mxu0 0.0
    %200 = vmatpush1.msra.mxu0 0.0
    %201 = vmatprep.subr.mxu0 0.0
    %202 = vmatpush1.msra.mxu0 0.0
    %203 = vmatprep.subr.mxu0 0.0
    %204 = vmatpush1.msra.mxu0 0.0
    %205 = vmatprep.subr.mxu0 0.0
    %206 = vmatpush1.msra.mxu0 0.0
    %207 = vmatprep.subr.mxu0 0.0
    %208 = vmatpush1.msra.mxu0 0.0
    %209 = vmatprep.subr.mxu0 0.0
    %210 = vmatpush1.msra.mxu0 0.0
    %211 = vmatprep.subr.mxu0 0.0
    %212 = vmatpush1.msra.mxu0 0.0
    %213 = vmatprep.subr.mxu0 0.0
    %214 = vmatpush1.msra.mxu0 0.0
    %215 = vmatprep.subr.mxu0 0.0
    %216 = vmatpush1.msra.mxu0 0.0
    %217 = vmatprep.subr.mxu0 0.0
    %218 = vmatpush1.msra.mxu0 %v182
    %219 = vmatprep.subr.mxu0 0.0
    %220 = vmatpush1.msra.mxu0 %v181
    %221 = vmatprep.subr.mxu0 0.0
    %222 = vmatpush1.msra.mxu0 %v180
    %223 = vmatprep.subr.mxu0 0.0
    %224 = vmatpush1.msra.mxu0 %v179
    %225 = vmatprep.subr.mxu0 0.0
    %226 = vmatpush2.msra.mxu0 0.0
    %227 = vmatprep.subr.mxu0 0.0
    %228 = vmatpush2.msra.mxu0 0.0
    %229 = vmatprep.subr.mxu0 0.0
    %230 = vmatpush2.msra.mxu0 0.0
    %231 = vmatprep.subr.mxu0 0.0
    %232 = vmatpush2.msra.mxu0 0.0
    %233 = vmatprep.subr.mxu0 0.0
    %234 = vmatpush2.msra.mxu0 0.0
    %235 = vmatprep.subr.mxu0 0.0
    %236 = vmatpush2.msra.mxu0 0.0
    %237 = vmatprep.subr.mxu0 0.0
    %238 = vmatpush2.msra.mxu0 0.0
    %239 = vmatprep.subr.mxu0 0.0
    %240 = vmatpush2.msra.mxu0 0.0
    %241 = vmatprep.subr.mxu0 0.0
    %242 = vmatpush2.msra.mxu0 0.0
    %243 = vmatprep.subr.mxu0 0.0
    %244 = vmatpush2.msra.mxu0 0.0
    %245 = vmatprep.subr.mxu0 0.0
    %246 = vmatpush2.msra.mxu0 0.0
    %247 = vmatprep.subr.mxu0 0.0
    %248 = vmatpush2.msra.mxu0 0.0
    %249 = vmatprep.subr.mxu0 0.0
    %250 = vmatpush2.msra.mxu0 0.0
    %251 = vmatprep.subr.mxu0 0.0
    %252 = vmatpush2.msra.mxu0 0.0
    %253 = vmatprep.subr.mxu0 0.0
    %254 = vmatpush2.msra.mxu0 0.0
    %255 = vmatprep.subr.mxu0 0.0
    %256 = vmatpush2.msra.mxu0 0.0
    %257 = vmatprep.mubr.f32.mxu0 0.0
    %258 = vmatmul.mubr.f32.gmra.mxu0 %v191
    %v259 = vpop.f32.mrf.mxu0
    %v260 = vadd.f32 %v188, %v259
    %v261 = vpop.f32.mrf.mxu0
    %262 = vdwg.mxu0
    %vm263 = vcmask 31744
    %v264 = vsel %vm263, %v260, -inf
    %265 = vmax.xlane.f32.xlu0 %v264
    %v266 = vpop.xlane.xlu0 %265
    %v267 = vsub.f32 %v260, %v266
    %v268 = vmul.f32 %v267, 1.442695
    %v269 = vpow.pop %v268
    %v270 = vsel %vm263, %v269, 0.0
    %271 = vadd.xlane.f32.xlu0 %v270
    %v272 = vpop.xlane.xlu0 %271
    %v273 = vrcp.pop %v272
    %v274 = vmul.f32 %v269, %v273
    %275 = vst.msk [vmem:[%s9] sm:$0xff] %vm263, %v274
    %v276 = vld [vmem:[#allocation8] sm:$0xff]
    %v277 = vld [vmem:[#allocation8 + $0x8] sm:$0xff]
    %v278 = vld [vmem:[#allocation8 + $0x10] sm:$0xff]
    %v279 = vld [vmem:[#allocation8 + $0x18] sm:$0xff]
    %v280 = vld [vmem:[#allocation8 + $0x20] sm:$0xff]
    %v281 = vld [vmem:[#allocation8 + $0x28] sm:$0xff]
    %v282 = vld [vmem:[#allocation8 + $0x30] sm:$0xff]
    %v283 = vld [vmem:[#allocation8 + $0x38] sm:$0xff]
    %v284 = vld [vmem:[#allocation8 + $0x40] sm:$0xff]
    %v285 = vld [vmem:[#allocation8 + $0x48] sm:$0xff]
    %v286 = vld [vmem:[#allocation8 + $0x50] sm:$0xff]
    %v287 = vld [vmem:[#allocation8 + $0x58] sm:$0xff]
    %v288 = vld [vmem:[#allocation8 + $0x60] sm:$0xff]
    %v289 = vld [vmem:[#allocation8 + $0x68] sm:$0xff]
    %v290 = vld [vmem:[#allocation8 + $0x70] sm:$0xff]
    %v291 = vld [vmem:[#allocation8 + $0x78] sm:$0xff]
    %v292 = vld [vmem:[#allocation10] sm:$0xf]
    %v294 = vlaneseq
    %v295 = vshrl.u32 %v294, 7
    %v296 = vsub.s32 0, %v295
    %v297 = vrot.slane %v292, %v296
    %v298 = vlaneseq
    %v299 = vshrl.u32 %v298, 7
    %v300 = vsub.s32 1, %v299
    %v301 = vrot.slane %v292, %v300
    %v302 = vlaneseq
    %v303 = vshrl.u32 %v302, 7
    %v304 = vsub.s32 2, %v303
    %v305 = vrot.slane %v292, %v304
    %v306 = vlaneseq
    %v307 = vshrl.u32 %v306, 7
    %v308 = vsub.s32 3, %v307
    %v309 = vrot.slane %v292, %v308
    %314 = vmatprep.subr.mxu0 0.0
    %315 = vmatpush1.msra.mxu0 0.0
    %316 = vmatprep.subr.mxu0 0.0
    %317 = vmatpush1.msra.mxu0 0.0
    %318 = vmatprep.subr.mxu0 0.0
    %319 = vmatpush1.msra.mxu0 0.0
    %320 = vmatprep.subr.mxu0 0.0
    %321 = vmatpush1.msra.mxu0 0.0
    %322 = vmatprep.subr.mxu0 0.0
    %323 = vmatpush1.msra.mxu0 0.0
    %324 = vmatprep.subr.mxu0 0.0
    %325 = vmatpush1.msra.mxu0 0.0
    %326 = vmatprep.subr.mxu0 0.0
    %327 = vmatpush1.msra.mxu0 0.0
    %328 = vmatprep.subr.mxu0 0.0
    %329 = vmatpush1.msra.mxu0 0.0
    %330 = vmatprep.subr.mxu0 0.0
    %331 = vmatpush1.msra.mxu0 0.0
    %332 = vmatprep.subr.mxu0 0.0
    %333 = vmatpush1.msra.mxu0 0.0
    %334 = vmatprep.subr.mxu0 0.0
    %335 = vmatpush1.msra.mxu0 0.0
    %336 = vmatprep.subr.mxu0 0.0
    %337 = vmatpush1.msra.mxu0 0.0
    %338 = vmatprep.subr.mxu0 %v289
    %339 = vmatpush1.msra.mxu0 %v288
    %340 = vmatprep.subr.mxu0 %v285
    %341 = vmatpush1.msra.mxu0 %v284
    %342 = vmatprep.subr.mxu0 %v281
    %343 = vmatpush1.msra.mxu0 %v280
    %344 = vmatprep.subr.mxu0 %v277
    %345 = vmatpush1.msra.mxu0 %v276
    %346 = vmatprep.subr.mxu0 0.0
    %347 = vmatpush2.msra.mxu0 0.0
    %348 = vmatprep.subr.mxu0 0.0
    %349 = vmatpush2.msra.mxu0 0.0
    %350 = vmatprep.subr.mxu0 0.0
    %351 = vmatpush2.msra.mxu0 0.0
    %352 = vmatprep.subr.mxu0 0.0
    %353 = vmatpush2.msra.mxu0 0.0
    %354 = vmatprep.subr.mxu0 0.0
    %355 = vmatpush2.msra.mxu0 0.0
    %356 = vmatprep.subr.mxu0 0.0
    %357 = vmatpush2.msra.mxu0 0.0
    %358 = vmatprep.subr.mxu0 0.0
    %359 = vmatpush2.msra.mxu0 0.0
    %360 = vmatprep.subr.mxu0 0.0
    %361 = vmatpush2.msra.mxu0 0.0
    %362 = vmatprep.subr.mxu0 0.0
    %363 = vmatpush2.msra.mxu0 0.0
    %364 = vmatprep.subr.mxu0 0.0
    %365 = vmatpush2.msra.mxu0 0.0
    %366 = vmatprep.subr.mxu0 0.0
    %367 = vmatpush2.msra.mxu0 0.0
    %368 = vmatprep.subr.mxu0 0.0
    %369 = vmatpush2.msra.mxu0 0.0
    %370 = vmatprep.subr.mxu0 0.0
    %371 = vmatpush2.msra.mxu0 0.0
    %372 = vmatprep.subr.mxu0 0.0
    %373 = vmatpush2.msra.mxu0 0.0
    %374 = vmatprep.subr.mxu0 0.0
    %375 = vmatpush2.msra.mxu0 0.0
    %376 = vmatprep.subr.mxu0 0.0
    %377 = vmatpush2.msra.mxu0 0.0
    %378 = vmatprep.mubr.f32.mxu0 0.0
    %379 = vmatmul.mubr.f32.gmra.mxu0 %v106
    %v380 = vpop.f32.mrf.mxu0
    %v381 = vadd.f32 %v297, %v380
    %v382 = vpop.f32.mrf.mxu0
    %v383 = vadd.f32 %v301, %v382
    %384 = vdwg.mxu0
    %385 = vmatprep.subr.mxu0 0.0
    %386 = vmatpush1.msra.mxu0 0.0
    %387 = vmatprep.subr.mxu0 0.0
    %388 = vmatpush1.msra.mxu0 0.0
    %389 = vmatprep.subr.mxu0 0.0
    %390 = vmatpush1.msra.mxu0 0.0
    %391 = vmatprep.subr.mxu0 0.0
    %392 = vmatpush1.msra.mxu0 0.0
    %393 = vmatprep.subr.mxu0 0.0
    %394 = vmatpush1.msra.mxu0 0.0
    %395 = vmatprep.subr.mxu0 0.0
    %396 = vmatpush1.msra.mxu0 0.0
    %397 = vmatprep.subr.mxu0 0.0
    %398 = vmatpush1.msra.mxu0 0.0
    %399 = vmatprep.subr.mxu0 0.0
    %400 = vmatpush1.msra.mxu0 0.0
    %401 = vmatprep.subr.mxu0 0.0
    %402 = vmatpush1.msra.mxu0 0.0
    %403 = vmatprep.subr.mxu0 0.0
    %404 = vmatpush1.msra.mxu0 0.0
    %405 = vmatprep.subr.mxu0 0.0
    %406 = vmatpush1.msra.mxu0 0.0
    %407 = vmatprep.subr.mxu0 0.0
    %408 = vmatpush1.msra.mxu0 0.0
    %409 = vmatprep.subr.mxu0 %v291
    %410 = vmatpush1.msra.mxu0 %v290
    %411 = vmatprep.subr.mxu0 %v287
    %412 = vmatpush1.msra.mxu0 %v286
    %413 = vmatprep.subr.mxu0 %v283
    %414 = vmatpush1.msra.mxu0 %v282
    %415 = vmatprep.subr.mxu0 %v279
    %416 = vmatpush1.msra.mxu0 %v278
    %417 = vmatprep.subr.mxu0 0.0
    %418 = vmatpush2.msra.mxu0 0.0
    %419 = vmatprep.subr.mxu0 0.0
    %420 = vmatpush2.msra.mxu0 0.0
    %421 = vmatprep.subr.mxu0 0.0
    %422 = vmatpush2.msra.mxu0 0.0
    %423 = vmatprep.subr.mxu0 0.0
    %424 = vmatpush2.msra.mxu0 0.0
    %425 = vmatprep.subr.mxu0 0.0
    %426 = vmatpush2.msra.mxu0 0.0
    %427 = vmatprep.subr.mxu0 0.0
    %428 = vmatpush2.msra.mxu0 0.0
    %429 = vmatprep.subr.mxu0 0.0
    %430 = vmatpush2.msra.mxu0 0.0
    %431 = vmatprep.subr.mxu0 0.0
    %432 = vmatpush2.msra.mxu0 0.0
    %433 = vmatprep.subr.mxu0 0.0
    %434 = vmatpush2.msra.mxu0 0.0
    %435 = vmatprep.subr.mxu0 0.0
    %436 = vmatpush2.msra.mxu0 0.0
    %437 = vmatprep.subr.mxu0 0.0
    %438 = vmatpush2.msra.mxu0 0.0
    %439 = vmatprep.subr.mxu0 0.0
    %440 = vmatpush2.msra.mxu0 0.0
    %441 = vmatprep.subr.mxu0 0.0
    %442 = vmatpush2.msra.mxu0 0.0
    %443 = vmatprep.subr.mxu0 0.0
    %444 = vmatpush2.msra.mxu0 0.0
    %445 = vmatprep.subr.mxu0 0.0
    %446 = vmatpush2.msra.mxu0 0.0
    %447 = vmatprep.subr.mxu0 0.0
    %448 = vmatpush2.msra.mxu0 0.0
    %449 = vmatprep.mubr.f32.mxu0 0.0
    %450 = vmatmul.mubr.f32.gmra.mxu0 %v106
    %v451 = vpop.f32.mrf.mxu0
    %v452 = vadd.f32 %v305, %v451
    %v453 = vpop.f32.mrf.mxu0
    %v454 = vadd.f32 %v309, %v453
    %455 = vdwg.mxu0
    %v456 = vmax.f32 %v381, 0.0
    %v457 = vmax.f32 %v383, 0.0
    %v458 = vmax.f32 %v452, 0.0
    %v459 = vmax.f32 %v454, 0.0
    %v460 = vld [vmem:[%s7] sm:$0xff]
    %v461 = vld [vmem:[%s7 + $0x8] sm:$0xff]
    %v464 = vcombine.high %v460, %v460
    %v465 = vcombine.high %v461, %v461
    %v467 = vsel %vm263, %v274, 0
    %vm469 = vcmask 1043456
    %v470 = vsel %vm469, %v460, 0
    %v472 = vsel %vm469, %v464, 0
    %v474 = vsel %vm469, %v461, 0
    %v476 = vsel %vm469, %v465, 0
    %478 = vmatprep.subr.mxu0 0.0
    %479 = vmatpush1.msra.mxu0 0.0
    %480 = vmatprep.subr.mxu0 0.0
    %481 = vmatpush1.msra.mxu0 0.0
    %482 = vmatprep.subr.mxu0 0.0
    %483 = vmatpush1.msra.mxu0 0.0
    %484 = vmatprep.subr.mxu0 0.0
    %485 = vmatpush1.msra.mxu0 0.0
    %486 = vmatprep.subr.mxu0 0.0
    %487 = vmatpush1.msra.mxu0 0.0
    %488 = vmatprep.subr.mxu0 0.0
    %489 = vmatpush1.msra.mxu0 0.0
    %490 = vmatprep.subr.mxu0 0.0
    %491 = vmatpush1.msra.mxu0 0.0
    %492 = vmatprep.subr.mxu0 0.0
    %493 = vmatpush1.msra.mxu0 0.0
    %494 = vmatprep.subr.mxu0 0.0
    %495 = vmatpush1.msra.mxu0 0.0
    %496 = vmatprep.subr.mxu0 0.0
    %497 = vmatpush1.msra.mxu0 0.0
    %498 = vmatprep.subr.mxu0 0.0
    %499 = vmatpush1.msra.mxu0 0.0
    %500 = vmatprep.subr.mxu0 0.0
    %501 = vmatpush1.msra.mxu0 0.0
    %502 = vmatprep.subr.mxu0 0.0
    %503 = vmatpush1.msra.mxu0 0.0
    %504 = vmatprep.subr.mxu0 0.0
    %505 = vmatpush1.msra.mxu0 0.0
    %506 = vmatprep.subr.mxu0 0.0
    %507 = vmatpush1.msra.mxu0 0.0
    %508 = vmatprep.subr.mxu0 %v472
    %509 = vmatpush1.msra.mxu0 %v470
    %510 = vmatprep.subr.mxu0 0.0
    %511 = vmatpush2.msra.mxu0 0.0
    %512 = vmatprep.subr.mxu0 0.0
    %513 = vmatpush2.msra.mxu0 0.0
    %514 = vmatprep.subr.mxu0 0.0
    %515 = vmatpush2.msra.mxu0 0.0
    %516 = vmatprep.subr.mxu0 0.0
    %517 = vmatpush2.msra.mxu0 0.0
    %518 = vmatprep.subr.mxu0 0.0
    %519 = vmatpush2.msra.mxu0 0.0
    %520 = vmatprep.subr.mxu0 0.0
    %521 = vmatpush2.msra.mxu0 0.0
    %522 = vmatprep.subr.mxu0 0.0
    %523 = vmatpush2.msra.mxu0 0.0
    %524 = vmatprep.subr.mxu0 0.0
    %525 = vmatpush2.msra.mxu0 0.0
    %526 = vmatprep.subr.mxu0 0.0
    %527 = vmatpush2.msra.mxu0 0.0
    %528 = vmatprep.subr.mxu0 0.0
    %529 = vmatpush2.msra.mxu0 0.0
    %530 = vmatprep.subr.mxu0 0.0
    %531 = vmatpush2.msra.mxu0 0.0
    %532 = vmatprep.subr.mxu0 0.0
    %533 = vmatpush2.msra.mxu0 0.0
    %534 = vmatprep.subr.mxu0 0.0
    %535 = vmatpush2.msra.mxu0 0.0
    %536 = vmatprep.subr.mxu0 0.0
    %537 = vmatpush2.msra.mxu0 0.0
    %538 = vmatprep.subr.mxu0 0.0
    %539 = vmatpush2.msra.mxu0 0.0
    %540 = vmatprep.subr.mxu0 0.0
    %541 = vmatpush2.msra.mxu0 0.0
    %542 = vmatprep.mubr.f32.mxu0 0.0
    %543 = vmatmul.mubr.f32.gmra.mxu0 %v467
    %v544 = vpop.f32.mrf.mxu0
    %v545 = vadd.f32 0.0, %v544
    %v546 = vpop.f32.mrf.mxu0
    %v547 = vadd.f32 0.0, %v546
    %548 = vdwg.mxu0
    %549 = vmatprep.subr.mxu0 0.0
    %550 = vmatpush1.msra.mxu0 0.0
    %551 = vmatprep.subr.mxu0 0.0
    %552 = vmatpush1.msra.mxu0 0.0
    %553 = vmatprep.subr.mxu0 0.0
    %554 = vmatpush1.msra.mxu0 0.0
    %555 = vmatprep.subr.mxu0 0.0
    %556 = vmatpush1.msra.mxu0 0.0
    %557 = vmatprep.subr.mxu0 0.0
    %558 = vmatpush1.msra.mxu0 0.0
    %559 = vmatprep.subr.mxu0 0.0
    %560 = vmatpush1.msra.mxu0 0.0
    %561 = vmatprep.subr.mxu0 0.0
    %562 = vmatpush1.msra.mxu0 0.0
    %563 = vmatprep.subr.mxu0 0.0
    %564 = vmatpush1.msra.mxu0 0.0
    %565 = vmatprep.subr.mxu0 0.0
    %566 = vmatpush1.msra.mxu0 0.0
    %567 = vmatprep.subr.mxu0 0.0
    %568 = vmatpush1.msra.mxu0 0.0
    %569 = vmatprep.subr.mxu0 0.0
    %570 = vmatpush1.msra.mxu0 0.0
    %571 = vmatprep.subr.mxu0 0.0
    %572 = vmatpush1.msra.mxu0 0.0
    %573 = vmatprep.subr.mxu0 0.0
    %574 = vmatpush1.msra.mxu0 0.0
    %575 = vmatprep.subr.mxu0 0.0
    %576 = vmatpush1.msra.mxu0 0.0
    %577 = vmatprep.subr.mxu0 0.0
    %578 = vmatpush1.msra.mxu0 0.0
    %579 = vmatprep.subr.mxu0 %v476
    %580 = vmatpush1.msra.mxu0 %v474
    %581 = vmatprep.subr.mxu0 0.0
    %582 = vmatpush2.msra.mxu0 0.0
    %583 = vmatprep.subr.mxu0 0.0
    %584 = vmatpush2.msra.mxu0 0.0
    %585 = vmatprep.subr.mxu0 0.0
    %586 = vmatpush2.msra.mxu0 0.0
    %587 = vmatprep.subr.mxu0 0.0
    %588 = vmatpush2.msra.mxu0 0.0
    %589 = vmatprep.subr.mxu0 0.0
    %590 = vmatpush2.msra.mxu0 0.0
    %591 = vmatprep.subr.mxu0 0.0
    %592 = vmatpush2.msra.mxu0 0.0
    %593 = vmatprep.subr.mxu0 0.0
    %594 = vmatpush2.msra.mxu0 0.0
    %595 = vmatprep.subr.mxu0 0.0
    %596 = vmatpush2.msra.mxu0 0.0
    %597 = vmatprep.subr.mxu0 0.0
    %598 = vmatpush2.msra.mxu0 0.0
    %599 = vmatprep.subr.mxu0 0.0
    %600 = vmatpush2.msra.mxu0 0.0
    %601 = vmatprep.subr.mxu0 0.0
    %602 = vmatpush2.msra.mxu0 0.0
    %603 = vmatprep.subr.mxu0 0.0
    %604 = vmatpush2.msra.mxu0 0.0
    %605 = vmatprep.subr.mxu0 0.0
    %606 = vmatpush2.msra.mxu0 0.0
    %607 = vmatprep.subr.mxu0 0.0
    %608 = vmatpush2.msra.mxu0 0.0
    %609 = vmatprep.subr.mxu0 0.0
    %610 = vmatpush2.msra.mxu0 0.0
    %611 = vmatprep.subr.mxu0 0.0
    %612 = vmatpush2.msra.mxu0 0.0
    %613 = vmatprep.mubr.f32.mxu0 0.0
    %614 = vmatmul.mubr.f32.gmra.mxu0 %v467
    %v615 = vpop.f32.mrf.mxu0
    %v616 = vadd.f32 0.0, %v615
    %v617 = vpop.f32.mrf.mxu0
    %v618 = vadd.f32 0.0, %v617
    %619 = vdwg.mxu0
    %v620 = vmul.f32 %v545, %v456
    %v621 = vmul.f32 %v547, %v457
    %v622 = vmul.f32 %v616, %v458
    %v623 = vmul.f32 %v618, %v459
    %v624 = vadd.f32 %v620, %v621
    %v625 = vadd.f32 %v624, %v622
    %v626 = vadd.f32 %v625, %v623
    %627 = vst [vmem:[#allocation11] sm:$0xff] %v626
    // Predicated region
    $region54: #{tpu_custom_call.1} parent=1 // pred_check
      _
    $region55: #{tpu_custom_call.1} parent=1 // pred_check_branch
      %629 = sbr.rel (0) target = $region57
    $region56: #{tpu_custom_call.1} parent=1 // pred_region
      %s631 = ssub.s32 128, 128
      %632 = vsyncadd [#allocation4], %s631
      %s634 = sshll.u32 [#allocation11], 4
      %s635 = int_to_ptr.vmem [resolvable:$true] %s634
      %637 = dma.vmem_to_hbm [thread:$0]  %s635, 128, %s8, [#allocation4]
    $region57: #{tpu_custom_call.1} parent=1 // pred_fallthru
      _
    // Predicated region
    $region58: #{tpu_custom_call.1} parent=1 // pred_check
      _
    $region59: #{tpu_custom_call.1} parent=1 // pred_check_branch
      %639 = sbr.rel (0) target = $region61
    $region60: #{tpu_custom_call.1} parent=1 // pred_region
      _
    $region61: #{tpu_custom_call.1} parent=1 // pred_fallthru
      _
    // Predicated region
    $region62: #{tpu_custom_call.1} parent=1 // pred_check
      _
    $region63: #{tpu_custom_call.1} parent=1 // pred_check_branch
      %641 = sbr.rel (0) target = $region65
    $region64: #{tpu_custom_call.1} parent=1 // pred_region
      %642 = dma.done [#allocation4], 128
    $region65: #{tpu_custom_call.1} parent=1 // pred_fallthru
      _
    // Predicated region
    $region66: #{tpu_custom_call.1} parent=1 // pred_check
      _
    $region67: #{tpu_custom_call.1} parent=1 // pred_check_branch
      %644 = sbr.rel (0) target = $region69
    $region68: #{tpu_custom_call.1} parent=1 // pred_region
      _
    $region69: #{tpu_custom_call.1} parent=1 // pred_fallthru
      _
    %645 = vsyncpa [#allocation3], 1
    %646 = vsyncpa [#allocation6], 1
    %647 = vsyncpa [#allocation9], 1
    %648 = vsyncpa [#allocation4], 1

</llo_original>
